<compile_context>
chip_gen: v7x
topology: tpu7x:2x2x1
jax: 0.10.0
libtpu: 0.0.40
codegen_flags: <defaults>
</compile_context>

<pallas_src>
import functools
import math

import jax
import jax.numpy as jnp
import numpy as np
from jax import lax
from jax.experimental import pallas as pl
from jax.experimental.pallas import tpu as pltpu

_LANE = 128


def _gcn_embd4_kernel(x_ref, g1_ref, g2_ref, o_ref, max_acc, sum_acc, *,
                      inv_hw, hw, t_hw, lane_dense, ragged):
    """Streams X tiles (1, C, t_hw); running max/sum over HW live in VMEM.

    lane_dense=True : accumulators are (1, C, 128); tiles are consumed as
      128-lane chunks with elementwise max/add (VALU only).  Cross-lane
      reduce + tiny GCN epilogue only at k == last.
    lane_dense=False: single small full-extent tile (t_hw == HW < 128-aligned),
      one direct axis=-1 reduce in total (negligible XLU cost).
    """
    k = pl.program_id(1)

    @pl.when(k == 0)
    def _():
        max_acc[...] = jnp.full(max_acc.shape, -jnp.inf, max_acc.dtype)
        sum_acc[...] = jnp.zeros(sum_acc.shape, sum_acc.dtype)

    x = x_ref[...]                                       # (1, C, t_hw) f32
    c = x.shape[1]

    if lane_dense:
        n_chunks = t_hw // _LANE
        m = max_acc[...]                                 # (1, C, 128)
        s = sum_acc[...]
        if ragged:
            lane_pos = lax.broadcasted_iota(jnp.int32, (1, c, _LANE), 2)
            base = k * t_hw
        for i in range(n_chunks):                        # unrolled, VALU only
            chunk = x[:, :, i * _LANE:(i + 1) * _LANE]   # lane-aligned slice
            if ragged:
                valid = lane_pos < (hw - base - i * _LANE)
                cm = jnp.where(valid, chunk, -jnp.inf)
                cs = jnp.where(valid, chunk, 0.0)
            else:
                cm = cs = chunk
            m = jnp.maximum(m, cm)
            s = s + cs
        max_acc[...] = m
        sum_acc[...] = s
    else:
        max_acc[...] = jnp.maximum(max_acc[...], jnp.max(x, axis=-1))
        sum_acc[...] = sum_acc[...] + jnp.sum(x, axis=-1)

    @pl.when(k == pl.num_programs(1) - 1)
    def _():
        if lane_dense:
            mpool = jnp.max(max_acc[...], axis=-1)            # (1, C)
            apool = jnp.sum(sum_acc[...], axis=-1) * inv_hw    # (1, C)
        else:
            mpool = max_acc[...]                               # (1, C)
            apool = sum_acc[...] * inv_hw

        g1 = g1_ref[...]                                       # (C16, C)
        g2 = g2_ref[...]                                       # (C16, C)
        dims = (((1,), (1,)), ((), ()))
        membd = jnp.maximum(
            lax.dot_general(mpool, g1, dims,
                            preferred_element_type=jnp.float32), 0.0)  # (1,C16)
        aembd = jnp.maximum(
            lax.dot_general(apool, g1, dims,
                            preferred_element_type=jnp.float32), 0.0)
        out = jnp.dot(membd + aembd, g2,
                      preferred_element_type=jnp.float32)               # (1,C)
        o_ref[...] = jax.nn.sigmoid(out).reshape(o_ref.shape).astype(o_ref.dtype)


def _vmem_plan():
    """(per-tile byte budget, vmem_limit_bytes), generation-aware."""
    cap = 0
    try:
        cap = int(pltpu.get_tpu_info().vmem_capacity_bytes)
    except Exception:
        cap = 0
    if not cap:
        cap = 128 * 1024 * 1024
    if cap <= 64 * 1024 * 1024:
        # v7x-class: 64 MiB VMEM but ~3.2 TB/s HBM -> big tiles to amortize
        # the ~0.35 us/step overhead; 2x16 MiB buffers + weights fit 48 MiB.
        return 16 * 1024 * 1024, 48 * 1024 * 1024
    # v5e/v6e-class (128 MiB physical): 8 MiB tiles, explicit 32 MiB scoped
    # limit (above the 16/32 MiB defaults) so buffering isn't shrunk.
    return 8 * 1024 * 1024, 32 * 1024 * 1024


def _choose_hw_tile(hw, c, target_bytes):
    """Returns (t_hw, grid_k).

    * Whole axis fits the budget (or HW <= 128) -> single full-extent tile.
    * Otherwise: 128-multiple tile sized to the budget, grid = cdiv(HW, t_hw),
      ragged last tile masked inside the kernel (never a giant unaligned
      full-axis block that could blow VMEM).
    * DMA burst floor: >= 512 lanes when that stays within ~1.5x the budget.
    """
    bytes_per_col = c * 4
    if hw <= _LANE or hw * bytes_per_col <= target_bytes:
        return hw, 1
    cols = max(_LANE, (target_bytes // bytes_per_col) // _LANE * _LANE)
    if cols < 512 and 2 * 512 * bytes_per_col <= 3 * target_bytes:
        cols = 512
    return cols, pl.cdiv(hw, cols)


def gcn_embd4_forward(X, A, params, *, target_bytes=None, vmem_limit_bytes=None):
    """X: (B, C, H, W) NCHW float32, A: (20, 20). Returns (B, C, 1, 1)."""
    B, C, H, W = X.shape
    HW = H * W
    C16 = params["gc1_w1"].shape[1]

    plan_tile, plan_limit = _vmem_plan()
    if target_bytes is None:
        target_bytes = plan_tile
    if vmem_limit_bytes is None:
        vmem_limit_bytes = plan_limit

    # Tiny, X-independent GCN weight construction: one-time XLA matmuls.
    def gc(w1, w2):
        support = A @ w1            # (20, C16)
        return support.T @ w2       # (C16, C)

    g1 = gc(params["gc1_w1"], params["gc1_w2"]).astype(jnp.float32)
    g2 = gc(params["gc2_w1"], params["gc2_w2"]).astype(jnp.float32)

    # Free metadata reshape (contiguous H,W merge) -- no NCHW transpose and
    # no extra HBM pass; the kernel streams over the lane (HW) axis.
    x = X.reshape(B, C, HW)

    t_hw, grid_k = _choose_hw_tile(HW, C, target_bytes)
    lane_dense = (t_hw % _LANE == 0)
    ragged = lane_dense and (HW % t_hw != 0)
    if not lane_dense:
        assert grid_k == 1 and t_hw == HW   # only small full-extent tiles

    acc_shape = (1, C, _LANE) if lane_dense else (1, C)

    kernel = functools.partial(
        _gcn_embd4_kernel, inv_hw=1.0 / HW, hw=HW, t_hw=t_hw,
        lane_dense=lane_dense, ragged=ragged)

    cost = pl.CostEstimate(
        flops=int(2 * B * C * HW + 4 * B * C * C16 + 2 * B * C16 * C),
        transcendentals=int(B * C),
        bytes_accessed=int(B * C * HW * 4 + 2 * C16 * C * 4 + B * C * 4),
    )

    out = pl.pallas_call(
        kernel,
        # Batch on a leading untiled axis so the tiled last two dims of every
        # block are either 128-multiples or equal to the full array dims.
        out_shape=jax.ShapeDtypeStruct((B, 1, C), jnp.float32),
        grid_spec=pltpu.PrefetchScalarGridSpec(
            num_scalar_prefetch=0,
            grid=(B, grid_k),
            in_specs=[
                pl.BlockSpec((1, C, t_hw), lambda b, k: (b, 0, k)),
                pl.BlockSpec((C16, C), lambda b, k: (0, 0)),
                pl.BlockSpec((C16, C), lambda b, k: (0, 0)),
            ],
            out_specs=pl.BlockSpec((1, 1, C), lambda b, k: (b, 0, 0)),
            scratch_shapes=[
                pltpu.VMEM(acc_shape, jnp.float32),   # running max
                pltpu.VMEM(acc_shape, jnp.float32),   # running sum
            ],
        ),
        compiler_params=pltpu.CompilerParams(
            dimension_semantics=("parallel", "arbitrary"),
            vmem_limit_bytes=int(vmem_limit_bytes)),
        cost_estimate=cost,
    )(x, g1, g2)
    return out.reshape(B, C, 1, 1)


def init_params(key, in_channel):
    c16 = in_channel // 16
    ks = jax.random.split(key, 4)

    def uniform(k, shape, fan):
        stdv = 1.0 / math.sqrt(fan)
        return jax.random.uniform(k, shape, jnp.float32, -stdv, stdv)

    return {
        # AGCN1.reset_parameters: w1 ~ U(-1/sqrt(in),1/sqrt(in)) over (20, in)
        #                         w2 ~ U(-1/sqrt(out),1/sqrt(out)) over (20, out)
        "gc1_w1": uniform(ks[0], (20, c16), c16),
        "gc1_w2": uniform(ks[1], (20, in_channel), in_channel),
        "gc2_w1": uniform(ks[2], (20, c16), c16),
        "gc2_w2": uniform(ks[3], (20, in_channel), in_channel),
    }


def reference_forward(X, A, p):
    """Pure-JAX reference mirroring the PyTorch module exactly."""
    B, C, H, W = X.shape
    mpool = jnp.max(X.reshape(B, C, -1), axis=-1)
    apool = jnp.mean(X.reshape(B, C, -1), axis=-1)

    def gc(w1, w2):
        support = A @ w1
        return support.T @ w2

    g1 = gc(p["gc1_w1"], p["gc1_w2"])
    g2 = gc(p["gc2_w1"], p["gc2_w2"])
    m = jax.nn.relu(mpool @ g1.T)
    a = jax.nn.relu(apool @ g1.T)
    m = m @ g2
    a = a @ g2
    return jax.nn.sigmoid(m + a).reshape(B, C, 1, 1)


if __name__ == "__main__":
    root = jax.random.PRNGKey(0)

    def run_case(case_id, B, C, H, W, target_bytes=None):
        kx, ka, kp = jax.random.split(jax.random.fold_in(root, case_id), 3)
        X = jax.random.normal(kx, (B, C, H, W), jnp.float32)
        A = jax.random.normal(ka, (20, 20), jnp.float32)
        params = init_params(kp, C)
        out = jax.block_until_ready(
            gcn_embd4_forward(X, A, params, target_bytes=target_bytes))
        ref = jax.block_until_ready(reference_forward(X, A, params))
        assert out.shape == (B, C, 1, 1)
        np.testing.assert_allclose(np.asarray(out), np.asarray(ref),
                                   rtol=1e-4, atol=2e-5)

    # Primary: 128-aligned HW, single lane-dense tile (two 128-lane chunks).
    run_case(0, B=2, C=64, H=16, W=16)
    # Small unaligned spatial (HW=64 < 128): single full-extent tile path.
    run_case(1, B=2, C=64, H=8, W=8)
    # Aligned multi-tile streaming path (forced tiny tile budget).
    run_case(2, B=2, C=64, H=32, W=32, target_bytes=64 * 1024)
    # Unaligned large-HW path (56x56 = 3136): ragged, masked last tile.
    run_case(3, B=2, C=64, H=56, W=56, target_bytes=64 * 1024)

    print("KERNEL_OK")
</pallas_src>

<mosaic_0001>
module attributes {stable_mosaic.version = 11 : i64} {
  func.func @_gcn_embd4_kernel(%arg0: i32, %arg1: i32, %arg2: memref<1x64x256xf32, #tpu.memory_space<vmem>>, %arg3: memref<4x64xf32, #tpu.memory_space<vmem>>, %arg4: memref<4x64xf32, #tpu.memory_space<vmem>>, %arg5: memref<1x1x64xf32, #tpu.memory_space<vmem>>, %arg6: memref<1x64x128xf32, #tpu.memory_space<vmem>>, %arg7: memref<1x64x128xf32, #tpu.memory_space<vmem>>) attributes {dimension_semantics = [#tpu.dimension_semantics<parallel>, #tpu.dimension_semantics<arbitrary>], iteration_bounds = array<i64: 2, 1>, scalar_prefetch = 0 : i64, scratch_operands = 2 : i64, tpu.core_type = #tpu.core_type<tc>, window_params = [{transform_indices = @transform_0, window_bounds = array<i64: 1, 64, 256>}, {pipeline_mode = #tpu.pipeline_mode<synchronous>, transform_indices = @transform_1, window_bounds = array<i64: 4, 64>}, {pipeline_mode = #tpu.pipeline_mode<synchronous>, transform_indices = @transform_2, window_bounds = array<i64: 4, 64>}, {transform_indices = @transform_3, window_bounds = array<i64: 1, 1, 64>}]} {
    %c0_i32 = arith.constant 0 : i32
    %0 = arith.cmpi eq, %arg1, %c0_i32 : i32
    %1 = arith.extui %0 : i1 to i32
    %c0_i32_0 = arith.constant 0 : i32
    %2 = arith.cmpi ne, %1, %c0_i32_0 : i32
    scf.if %2 {
      %cst = arith.constant 0xFF800000 : f32
      %17 = vector.broadcast %cst : f32 to vector<1x64x128xf32>
      %c0_17 = arith.constant 0 : index
      %c0_18 = arith.constant 0 : index
      %c0_19 = arith.constant 0 : index
      %18 = vector.load %arg6[%c0_17, %c0_18, %c0_19] : memref<1x64x128xf32, #tpu.memory_space<vmem>>, vector<1x64x128xf32>
      tpu.vector_store %arg6[%c0_17, %c0_18, %c0_19], %17 {strides = array<i32>} : memref<1x64x128xf32, #tpu.memory_space<vmem>>, vector<1x64x128xf32>,
      %cst_20 = arith.constant 0.000000e+00 : f32
      %19 = vector.broadcast %cst_20 : f32 to vector<1x64x128xf32>
      %c0_21 = arith.constant 0 : index
      %c0_22 = arith.constant 0 : index
      %c0_23 = arith.constant 0 : index
      %20 = vector.load %arg7[%c0_21, %c0_22, %c0_23] : memref<1x64x128xf32, #tpu.memory_space<vmem>>, vector<1x64x128xf32>
      tpu.vector_store %arg7[%c0_21, %c0_22, %c0_23], %19 {strides = array<i32>} : memref<1x64x128xf32, #tpu.memory_space<vmem>>, vector<1x64x128xf32>,
    } else {
    }
    %c0 = arith.constant 0 : index
    %c0_1 = arith.constant 0 : index
    %c0_2 = arith.constant 0 : index
    %3 = vector.load %arg2[%c0, %c0_1, %c0_2] : memref<1x64x256xf32, #tpu.memory_space<vmem>>, vector<1x64x256xf32>
    %c0_3 = arith.constant 0 : index
    %c0_4 = arith.constant 0 : index
    %c0_5 = arith.constant 0 : index
    %4 = vector.load %arg6[%c0_3, %c0_4, %c0_5] : memref<1x64x128xf32, #tpu.memory_space<vmem>>, vector<1x64x128xf32>
    %c0_6 = arith.constant 0 : index
    %c0_7 = arith.constant 0 : index
    %c0_8 = arith.constant 0 : index
    %5 = vector.load %arg7[%c0_6, %c0_7, %c0_8] : memref<1x64x128xf32, #tpu.memory_space<vmem>>, vector<1x64x128xf32>
    %6 = vector.extract_strided_slice %3 {offsets = [0, 0, 0], sizes = [1, 64, 128], strides = [1, 1, 1]} : vector<1x64x256xf32> to vector<1x64x128xf32>
    %7 = arith.maximumf %4, %6 : vector<1x64x128xf32>
    %8 = arith.addf %5, %6 : vector<1x64x128xf32>
    %9 = vector.extract_strided_slice %3 {offsets = [0, 0, 128], sizes = [1, 64, 128], strides = [1, 1, 1]} : vector<1x64x256xf32> to vector<1x64x128xf32>
    %10 = arith.maximumf %7, %9 : vector<1x64x128xf32>
    %11 = arith.addf %8, %9 : vector<1x64x128xf32>
    %c0_9 = arith.constant 0 : index
    %c0_10 = arith.constant 0 : index
    %c0_11 = arith.constant 0 : index
    %12 = vector.load %arg6[%c0_9, %c0_10, %c0_11] : memref<1x64x128xf32, #tpu.memory_space<vmem>>, vector<1x64x128xf32>
    tpu.vector_store %arg6[%c0_9, %c0_10, %c0_11], %10 {strides = array<i32>} : memref<1x64x128xf32, #tpu.memory_space<vmem>>, vector<1x64x128xf32>,
    %c0_12 = arith.constant 0 : index
    %c0_13 = arith.constant 0 : index
    %c0_14 = arith.constant 0 : index
    %13 = vector.load %arg7[%c0_12, %c0_13, %c0_14] : memref<1x64x128xf32, #tpu.memory_space<vmem>>, vector<1x64x128xf32>
    tpu.vector_store %arg7[%c0_12, %c0_13, %c0_14], %11 {strides = array<i32>} : memref<1x64x128xf32, #tpu.memory_space<vmem>>, vector<1x64x128xf32>,
    %c0_i32_15 = arith.constant 0 : i32
    %14 = arith.cmpi eq, %arg1, %c0_i32_15 : i32
    %15 = arith.extui %14 : i1 to i32
    %c0_i32_16 = arith.constant 0 : i32
    %16 = arith.cmpi ne, %15, %c0_i32_16 : i32
    scf.if %16 {
      %c0_17 = arith.constant 0 : index
      %c0_18 = arith.constant 0 : index
      %c0_19 = arith.constant 0 : index
      %17 = vector.load %arg6[%c0_17, %c0_18, %c0_19] : memref<1x64x128xf32, #tpu.memory_space<vmem>>, vector<1x64x128xf32>
      %cst = arith.constant dense<0xFF800000> : vector<1x64xf32>
      %18 = vector.multi_reduction <maximumf>, %17, %cst [2] : vector<1x64x128xf32> to vector<1x64xf32>
      %c0_20 = arith.constant 0 : index
      %c0_21 = arith.constant 0 : index
      %c0_22 = arith.constant 0 : index
      %19 = vector.load %arg7[%c0_20, %c0_21, %c0_22] : memref<1x64x128xf32, #tpu.memory_space<vmem>>, vector<1x64x128xf32>
      %cst_23 = arith.constant dense<0.000000e+00> : vector<1x64xf32>
      %20 = vector.multi_reduction <add>, %19, %cst_23 [2] : vector<1x64x128xf32> to vector<1x64xf32>
      %cst_24 = arith.constant 3.906250e-03 : f32
      %21 = vector.broadcast %cst_24 : f32 to vector<1x64xf32>
      %22 = arith.mulf %20, %21 : vector<1x64xf32>
      %c0_25 = arith.constant 0 : index
      %c0_26 = arith.constant 0 : index
      %23 = vector.load %arg3[%c0_25, %c0_26] : memref<4x64xf32, #tpu.memory_space<vmem>>, vector<4x64xf32>
      %c0_27 = arith.constant 0 : index
      %c0_28 = arith.constant 0 : index
      %24 = vector.load %arg4[%c0_27, %c0_28] : memref<4x64xf32, #tpu.memory_space<vmem>>, vector<4x64xf32>
      %cst_29 = arith.constant dense<0.000000e+00> : vector<1x4xf32>
      %25 = tpu.matmul %18, %23, %cst_29 {dimension_numbers = #tpu.dot_dimension_numbers<[1], [1], [0], [0], [0, 0, 1, 0], [], []>} : vector<1x64xf32>, vector<4x64xf32>, vector<1x4xf32> -> vector<1x4xf32>
      %cst_30 = arith.constant 0.000000e+00 : f32
      %26 = vector.broadcast %cst_30 : f32 to vector<1x4xf32>
      %27 = arith.maximumf %25, %26 : vector<1x4xf32>
      %cst_31 = arith.constant dense<0.000000e+00> : vector<1x4xf32>
      %28 = tpu.matmul %22, %23, %cst_31 {dimension_numbers = #tpu.dot_dimension_numbers<[1], [1], [0], [0], [0, 0, 1, 0], [], []>} : vector<1x64xf32>, vector<4x64xf32>, vector<1x4xf32> -> vector<1x4xf32>
      %cst_32 = arith.constant 0.000000e+00 : f32
      %29 = vector.broadcast %cst_32 : f32 to vector<1x4xf32>
      %30 = arith.maximumf %28, %29 : vector<1x4xf32>
      %31 = arith.addf %27, %30 : vector<1x4xf32>
      %cst_33 = arith.constant dense<0.000000e+00> : vector<1x64xf32>
      %32 = tpu.matmul %31, %24, %cst_33 {dimension_numbers = #tpu.dot_dimension_numbers<[1], [0], [0], [1], [0, 0, 1, 1], [], []>} : vector<1x4xf32>, vector<4x64xf32>, vector<1x64xf32> -> vector<1x64xf32>
      %33 = arith.negf %32 : vector<1x64xf32>
      %34 = math.exp %33 : vector<1x64xf32>
      %cst_34 = arith.constant 1.000000e+00 : f32
      %35 = vector.broadcast %cst_34 : f32 to vector<1x64xf32>
      %36 = arith.addf %35, %34 : vector<1x64xf32>
      %37 = arith.divf %35, %36 : vector<1x64xf32>
      %38 = vector.shape_cast %37 : vector<1x64xf32> to vector<1x1x64xf32>
      %c0_35 = arith.constant 0 : index
      %c0_36 = arith.constant 0 : index
      %c0_37 = arith.constant 0 : index
      %39 = vector.load %arg5[%c0_35, %c0_36, %c0_37] : memref<1x1x64xf32, #tpu.memory_space<vmem>>, vector<1x1x64xf32>
      tpu.vector_store %arg5[%c0_35, %c0_36, %c0_37], %38 {strides = array<i32>} : memref<1x1x64xf32, #tpu.memory_space<vmem>>, vector<1x1x64xf32>,
    } else {
    }
    return
  }
  func.func @transform_0(%arg0: i32, %arg1: i32) -> (i32, i32, i32) {
    %c0_i32 = arith.constant 0 : i32
    %c0_i32_0 = arith.constant 0 : i32
    return %arg0, %c0_i32, %arg1 : i32, i32, i32
  }
  func.func @transform_1(%arg0: i32, %arg1: i32) -> (i32, i32) {
    %c0_i32 = arith.constant 0 : i32
    %c0_i32_0 = arith.constant 0 : i32
    %c0_i32_1 = arith.constant 0 : i32
    return %c0_i32, %c0_i32_0 : i32, i32
  }
  func.func @transform_2(%arg0: i32, %arg1: i32) -> (i32, i32) {
    %c0_i32 = arith.constant 0 : i32
    %c0_i32_0 = arith.constant 0 : i32
    %c0_i32_1 = arith.constant 0 : i32
    return %c0_i32, %c0_i32_0 : i32, i32
  }
  func.func @transform_3(%arg0: i32, %arg1: i32) -> (i32, i32, i32) {
    %c0_i32 = arith.constant 0 : i32
    %c0_i32_0 = arith.constant 0 : i32
    %c0_i32_1 = arith.constant 0 : i32
    return %arg0, %c0_i32, %c0_i32_0 : i32, i32, i32
  }
}

</mosaic_0001>

<llo_original>
// kernel: tpu_custom_call.1
$region0: #{tpu_custom_call.1}
  #allocation0 [shape = 'u32[]', space=smem, size = 0x4, offset = 0x4, fixed_abs, tag = 'smem constant byte address 0x4 - core index']
  #allocation1 [shape = 'u32[144,128]{1,0:T(1,128)}', space=vmem, size = 0x12000, scoped, tag = 'internal scratch']
  #allocation2 [shape = 'f32[1,64,128]{2,1,0:T(8,128)}', space=vmem, size = 0x8000, scoped, tag = 'scratch operand']
  #allocation3 [shape = 'f32[1,64,128]{2,1,0:T(8,128)}', space=vmem, size = 0x8000, scoped, tag = 'scratch operand']
  %s0 = inlined_call_operand.hbm [shape: f32[2,64,256], index: 0, kind: input, shape index: {}]
  %s1 = inlined_call_operand.hbm [shape: f32[4,64], index: 1, kind: input, shape index: {}]
  %s2 = inlined_call_operand.vmem [shape: f32[4,64], index: 2, kind: input, shape index: {}]
  %s3 = inlined_call_operand.hbm [shape: f32[2,1,64], index: 3, kind: output, shape index: {}]
  %s4 = sld [smem:[#allocation0]]
  $region61: #{tpu_custom_call.1} parent=0
    _
  %s6 = ssub.s32 1, %s4
  %s7 = scalar_select 0, %s6, %s4
  $region1: #{tpu_custom_call.1} parent=0
    #allocation4 [shape = 'u8[131072]{0}', space=vmem, size = 0x20000, scoped, tag = 'input window, operand 0']
    #allocation5 [shape = 's32[2]{0}', space=sflag, size = 0x8, scoped, tag = 'scoped memory for tpu_custom_call.1']
    #allocation6 [shape = 's32[2]{0}', space=sflag, size = 0x8, scoped, tag = 'scoped memory for tpu_custom_call.1']
    #allocation7 [shape = 'u8[2048]{0}', space=vmem, size = 0x800, scoped, tag = 'input window, operand 1, single buffered']
    #allocation8 [shape = 's32[1]{0}', space=sflag, size = 0x4, scoped, tag = 'scoped memory for tpu_custom_call.1']
    #allocation9 [shape = 'u8[1024]{0}', space=vmem, size = 0x400, scoped, tag = 'output window, operand 0']
    %8 = vsyncpa [#allocation5], 0
    %s9 = scalar_lea.sflag [#allocation5], 1
    %10 = vsyncpa %s9, 0
    %11 = vsyncpa [#allocation8], 0
    %12 = vsyncpa [#allocation6], 0
    %s13 = scalar_lea.sflag [#allocation6], 1
    %14 = vsyncpa %s13, 0
    loop: start=0, step=1, limit=4
    $region2: #{tpu_custom_call.1} parent=1 // loop_pre_header
      _
    $region3: #{tpu_custom_call.1} parent=1 // loop_header
      %s16 = sphi 0, %s20
      %p17 = scmp.ge.s32.totalorder %s16, 4
      %s23 = sphi 0, %s35
      %s24 = sphi 0, %s31
      %s25 = sphi 0, %s23
      %s26 = sphi 0, %s24
      %s27 = sphi 0, %s25
      %s28 = sphi 0, %s26
      %s40 = sphi 0, %s42
      %s43 = sphi 0, %s40
      %s44 = sphi 0, %s43
      %s60 = sphi 0, %s44
      %s64 = sphi 0, %s64
      %s66 = sphi 0, %s64
      %s67 = sphi 0, %s66
      %s81 = sphi 0, %s67
      %s85 = sphi 0, %s85
      %s87 = sphi 0, %s85
      %s88 = sphi 0, %s87
      %s102 = sphi 0, %s88
      %s108 = sphi 0, %s110
      %s111 = sphi 0, %s108
      %s112 = sphi 0, %s111
      %s128 = sphi 0, %s112
    $region4: #{tpu_custom_call.1} parent=1 // loop_header_branch
      %19 = sbr.rel (%p17) target = $region8
    $region5: #{tpu_custom_call.1} parent=1 // loop_body
      %s21 = ssub.s32 %s16, 1
      %s22 = ssub.s32 %s16, 2
      %s29 = sadd.s32 1, %s24
      %p30 = scmp.ge.s32.totalorder %s29, 1
      %s31 = scalar_select %p30, 0, %s29
      %s32 = sadd.s32 1, %s23
      %s33 = scalar_select %p30, %s32, %s23
      %p34 = scmp.ge.s32.totalorder %s33, 2
      %s35 = scalar_select %p34, 0, %s33
      %s36 = ssub.s32 %s23, %s35
      %s37 = ssub.s32 %s24, %s31
      %s38 = sor.u32 %s36, %s37
      %p39 = scmp.eq.s32.totalorder %s38, 0
      %s41 = sadd.s32 %s40, 1
      %s42 = scalar_select %p39, %s40, %s41
      %p45 = pneg %p39
      %p46 = scmp.eq.s32.totalorder %s16, 1
      %p47 = por %p45, %p46
      %p48 = scmp.ne.s32.totalorder %s40, %s43
      %p49 = scmp.eq.s32.totalorder %s16, 0
      %p50 = por %p48, %p49
      %p51 = scmp.ne.s32.totalorder %s40, %s43
      %p52 = scmp.eq.s32.totalorder %s21, 1
      %p53 = por %p51, %p52
      %p54 = scmp.ne.s32.totalorder %s43, %s44
      %p55 = scmp.eq.s32.totalorder %s21, 0
      %p56 = por %p54, %p55
      %p57 = scmp.ne.s32.totalorder %s43, %s44
      %p58 = scmp.eq.s32.totalorder %s22, 1
      %p59 = por %p57, %p58
      %p61 = scmp.ne.s32.totalorder %s44, %s60
      %p62 = scmp.eq.s32.totalorder %s22, 0
      %p63 = por %p61, %p62
      %s65 = sadd.s32 %s64, 1
      %p68 = scmp.eq.s32.totalorder %s16, 1
      %p69 = scmp.ne.s32.totalorder %s64, %s66
      %p70 = scmp.eq.s32.totalorder %s16, 0
      %p71 = por %p69, %p70
      %p72 = scmp.ne.s32.totalorder %s64, %s66
      %p73 = scmp.eq.s32.totalorder %s21, 1
      %p74 = por %p72, %p73
      %p75 = scmp.ne.s32.totalorder %s66, %s67
      %p76 = scmp.eq.s32.totalorder %s21, 0
      %p77 = por %p75, %p76
      %p78 = scmp.ne.s32.totalorder %s66, %s67
      %p79 = scmp.eq.s32.totalorder %s22, 1
      %p80 = por %p78, %p79
      %p82 = scmp.ne.s32.totalorder %s67, %s81
      %p83 = scmp.eq.s32.totalorder %s22, 0
      %p84 = por %p82, %p83
      %s86 = sadd.s32 %s85, 1
      %p89 = scmp.eq.s32.totalorder %s16, 1
      %p90 = scmp.ne.s32.totalorder %s85, %s87
      %p91 = scmp.eq.s32.totalorder %s16, 0
      %p92 = por %p90, %p91
      %p93 = scmp.ne.s32.totalorder %s85, %s87
      %p94 = scmp.eq.s32.totalorder %s21, 1
      %p95 = por %p93, %p94
      %p96 = scmp.ne.s32.totalorder %s87, %s88
      %p97 = scmp.eq.s32.totalorder %s21, 0
      %p98 = por %p96, %p97
      %p99 = scmp.ne.s32.totalorder %s87, %s88
      %p100 = scmp.eq.s32.totalorder %s22, 1
      %p101 = por %p99, %p100
      %p103 = scmp.ne.s32.totalorder %s88, %s102
      %p104 = scmp.eq.s32.totalorder %s22, 0
      %p105 = por %p103, %p104
      %s106 = ssub.s32 %s23, %s35
      %p107 = scmp.eq.s32.totalorder %s106, 0
      %s109 = sadd.s32 %s108, 1
      %s110 = scalar_select %p107, %s108, %s109
      %p113 = pneg %p107
      %p114 = scmp.eq.s32.totalorder %s16, 1
      %p115 = por %p113, %p114
      %p116 = scmp.ne.s32.totalorder %s108, %s111
      %p117 = scmp.eq.s32.totalorder %s16, 0
      %p118 = por %p116, %p117
      %p119 = scmp.ne.s32.totalorder %s108, %s111
      %p120 = scmp.eq.s32.totalorder %s21, 1
      %p121 = por %p119, %p120
      %p122 = scmp.ne.s32.totalorder %s111, %s112
      %p123 = scmp.eq.s32.totalorder %s21, 0
      %p124 = por %p122, %p123
      %p125 = scmp.ne.s32.totalorder %s111, %s112
      %p126 = scmp.eq.s32.totalorder %s22, 1
      %p127 = por %p125, %p126
      %p129 = scmp.ne.s32.totalorder %s112, %s128
      %p130 = scmp.eq.s32.totalorder %s22, 0
      %p131 = por %p129, %p130
      %p132 = scmp.le.s32.totalorder 1, %s16
      %p133 = scmp.lt.s32.totalorder %s16, 3
      %p134 = pnand %p132, %p133
      %p135 = pneg %p134
      // Predicated region
      $region9: #{tpu_custom_call.1} parent=5 // pred_check
        _
      $region10: #{tpu_custom_call.1} parent=5 // pred_check_branch
        %137 = sbr.rel (%p134) target = $region12
      $region11: #{tpu_custom_call.1} parent=5 // pred_region
        %s138 = ssub.s32 %s16, 1
        // Predicated region
        $region13: #{tpu_custom_call.1} parent=11 // pred_check
          %p139 = pneg %p77
        $region14: #{tpu_custom_call.1} parent=11 // pred_check_branch
          %141 = sbr.rel (%p139) target = $region16
        $region15: #{tpu_custom_call.1} parent=11 // pred_region
          %s143 = ssub.s32 64, 64
          %144 = vsyncadd [#allocation8], %s143
          %s146 = sshll.u32 [#allocation7], 4
          %s147 = int_to_ptr.vmem [resolvable:$true] %s146
          %149 = dma.hbm_to_vmem [thread:$0]  %s1, 64, %s147, [#allocation8]
        $region16: #{tpu_custom_call.1} parent=11 // pred_fallthru
          _
        // Predicated region
        $region17: #{tpu_custom_call.1} parent=11 // pred_check
          %p150 = pneg %p98
        $region18: #{tpu_custom_call.1} parent=11 // pred_check_branch
          %152 = sbr.rel (%p150) target = $region20
        $region19: #{tpu_custom_call.1} parent=11 // pred_region
          _
        $region20: #{tpu_custom_call.1} parent=11 // pred_fallthru
          _
      $region12: #{tpu_custom_call.1} parent=5 // pred_fallthru
        _
      %p153 = scmp.lt.s32.totalorder %s16, 2
      // Predicated region
      $region21: #{tpu_custom_call.1} parent=5 // pred_check
        %p154 = pneg %p153
      $region22: #{tpu_custom_call.1} parent=5 // pred_check_branch
        %156 = sbr.rel (%p154) target = $region24
      $region23: #{tpu_custom_call.1} parent=5 // pred_region
        // Predicated region
        $region25: #{tpu_custom_call.1} parent=23 // pred_check
          %p157 = pneg %p50
        $region26: #{tpu_custom_call.1} parent=23 // pred_check_branch
          %159 = sbr.rel (%p157) target = $region28
        $region27: #{tpu_custom_call.1} parent=23 // pred_region
          %s160 = sand.u32 %s40, 1
          %s161 = scalar_lea.sflag [#allocation5], %s160
          %s162 = sand.u32 %s40, 1
          %s163 = smul.addr %s162, 128
          %s164 = scalar_lea.vmem [#allocation4], %s163
          %s165 = smul.u32 2, %s24
          %s167 = ssub.s32 2048, 2048
          %168 = vsyncadd %s161, %s167
          %s169 = smul.addr %s23, 16
          %s170 = sadd.s32 %s165, %s169
          %s171 = smul.addr %s170, 128
          %s172 = scalar_lea.hbm %s0, %s171
          %s173 = sshll.u32 %s164, 4
          %s174 = int_to_ptr.vmem [resolvable:$true] %s173
          %179 = dma.hbm_to_vmem [thread:$0]  %s172, 2048, %s174, %s161, 256, 256, 16
        $region28: #{tpu_custom_call.1} parent=23 // pred_fallthru
          _
      $region24: #{tpu_custom_call.1} parent=5 // pred_fallthru
        _
      %p180 = scmp.le.s32.totalorder 1, %s16
      %p181 = scmp.lt.s32.totalorder %s16, 3
      %p182 = pnand %p180, %p181
      %p183 = pneg %p182
      // Predicated region
      $region29: #{tpu_custom_call.1} parent=5 // pred_check
        _
      $region30: #{tpu_custom_call.1} parent=5 // pred_check_branch
        %185 = sbr.rel (%p182) target = $region32
      $region31: #{tpu_custom_call.1} parent=5 // pred_region
        %s186 = ssub.s32 %s16, 1
        %s187 = sand.u32 %s43, 1
        %s188 = scalar_lea.sflag [#allocation5], %s187
        %s189 = sand.u32 %s43, 1
        %s190 = smul.addr %s189, 128
        %s191 = scalar_lea.vmem [#allocation4], %s190
        // Predicated region
        $region33: #{tpu_custom_call.1} parent=31 // pred_check
          %p192 = pneg %p56
        $region34: #{tpu_custom_call.1} parent=31 // pred_check_branch
          %194 = sbr.rel (%p192) target = $region36
        $region35: #{tpu_custom_call.1} parent=31 // pred_region
          %195 = dma.done %s188, 2048
        $region36: #{tpu_custom_call.1} parent=31 // pred_fallthru
          _
        // Predicated region
        $region37: #{tpu_custom_call.1} parent=31 // pred_check
          %p196 = pneg %p77
        $region38: #{tpu_custom_call.1} parent=31 // pred_check_branch
          %198 = sbr.rel (%p196) target = $region40
        $region39: #{tpu_custom_call.1} parent=31 // pred_region
          %199 = dma.done [#allocation8], 64
        $region40: #{tpu_custom_call.1} parent=31 // pred_fallthru
          _
        %s200 = sand.u32 %s43, 1
        %s201 = scalar_lea.sflag [#allocation5], %s200
        %s202 = sand.u32 %s43, 1
        %s203 = smul.addr %s202, 128
        %s204 = scalar_lea.vmem [#allocation4], %s203
        %p205 = pneg %p56
        %p206 = pneg %p53
        %p207 = pneg %p77
        %p208 = pneg %p74
        %p209 = pneg %p98
        %p210 = pneg %p95
        %p211 = pneg %p124
        %p212 = pneg %p121
        %s213 = sand.u32 %s111, 1
        %s214 = scalar_lea.sflag [#allocation6], %s213
        %s215 = sand.u32 %s111, 1
        %s216 = scalar_lea.vmem [#allocation9], %s215
        %s217 = smul.u32 2, %s26
        %p218 = scmp.eq.s32.totalorder %s26, 0
        // Predicated region
        $region41: #{tpu_custom_call.1} parent=31 // pred_check
          %p219 = pneg %p218
        $region42: #{tpu_custom_call.1} parent=31 // pred_check_branch
          %221 = sbr.rel (%p219) target = $region44
        $region43: #{tpu_custom_call.1} parent=31 // pred_region
          %222 = vst [vmem:[#allocation2] sm:$0xff] -inf
          %223 = vst [vmem:[#allocation2 + $0x8] sm:$0xff] -inf
          %224 = vst [vmem:[#allocation2 + $0x10] sm:$0xff] -inf
          %225 = vst [vmem:[#allocation2 + $0x18] sm:$0xff] -inf
          %226 = vst [vmem:[#allocation2 + $0x20] sm:$0xff] -inf
          %227 = vst [vmem:[#allocation2 + $0x28] sm:$0xff] -inf
          %228 = vst [vmem:[#allocation2 + $0x30] sm:$0xff] -inf
          %229 = vst [vmem:[#allocation2 + $0x38] sm:$0xff] -inf
          %230 = vst [vmem:[#allocation3] sm:$0xff] 0.0
          %231 = vst [vmem:[#allocation3 + $0x8] sm:$0xff] 0.0
          %232 = vst [vmem:[#allocation3 + $0x10] sm:$0xff] 0.0
          %233 = vst [vmem:[#allocation3 + $0x18] sm:$0xff] 0.0
          %234 = vst [vmem:[#allocation3 + $0x20] sm:$0xff] 0.0
          %235 = vst [vmem:[#allocation3 + $0x28] sm:$0xff] 0.0
          %236 = vst [vmem:[#allocation3 + $0x30] sm:$0xff] 0.0
          %237 = vst [vmem:[#allocation3 + $0x38] sm:$0xff] 0.0
        $region44: #{tpu_custom_call.1} parent=31 // pred_fallthru
          _
        %v238 = vld [vmem:[%s191] sm:$0xff]
        %v239 = vld [vmem:[%s191 + $0x8] sm:$0xff]
        %v240 = vld [vmem:[%s191 + $0x10] sm:$0xff]
        %v241 = vld [vmem:[%s191 + $0x18] sm:$0xff]
        %v242 = vld [vmem:[%s191 + $0x20] sm:$0xff]
        %v243 = vld [vmem:[%s191 + $0x28] sm:$0xff]
        %v244 = vld [vmem:[%s191 + $0x30] sm:$0xff]
        %v245 = vld [vmem:[%s191 + $0x38] sm:$0xff]
        %v246 = vld [vmem:[%s191 + $0x40] sm:$0xff]
        %v247 = vld [vmem:[%s191 + $0x48] sm:$0xff]
        %v248 = vld [vmem:[%s191 + $0x50] sm:$0xff]
        %v249 = vld [vmem:[%s191 + $0x58] sm:$0xff]
        %v250 = vld [vmem:[%s191 + $0x60] sm:$0xff]
        %v251 = vld [vmem:[%s191 + $0x68] sm:$0xff]
        %v252 = vld [vmem:[%s191 + $0x70] sm:$0xff]
        %v253 = vld [vmem:[%s191 + $0x78] sm:$0xff]
        %v254 = vld [vmem:[#allocation2] sm:$0xff]
        %v255 = vld [vmem:[#allocation2 + $0x8] sm:$0xff]
        %v256 = vld [vmem:[#allocation2 + $0x10] sm:$0xff]
        %v257 = vld [vmem:[#allocation2 + $0x18] sm:$0xff]
        %v258 = vld [vmem:[#allocation2 + $0x20] sm:$0xff]
        %v259 = vld [vmem:[#allocation2 + $0x28] sm:$0xff]
        %v260 = vld [vmem:[#allocation2 + $0x30] sm:$0xff]
        %v261 = vld [vmem:[#allocation2 + $0x38] sm:$0xff]
        %v262 = vld [vmem:[#allocation3] sm:$0xff]
        %v263 = vld [vmem:[#allocation3 + $0x8] sm:$0xff]
        %v264 = vld [vmem:[#allocation3 + $0x10] sm:$0xff]
        %v265 = vld [vmem:[#allocation3 + $0x18] sm:$0xff]
        %v266 = vld [vmem:[#allocation3 + $0x20] sm:$0xff]
        %v267 = vld [vmem:[#allocation3 + $0x28] sm:$0xff]
        %v268 = vld [vmem:[#allocation3 + $0x30] sm:$0xff]
        %v269 = vld [vmem:[#allocation3 + $0x38] sm:$0xff]
        %v270 = vmax.f32 %v254, %v238
        %v271 = vmax.f32 %v255, %v240
        %v272 = vmax.f32 %v256, %v242
        %v273 = vmax.f32 %v257, %v244
        %v274 = vmax.f32 %v258, %v246
        %v275 = vmax.f32 %v259, %v248
        %v276 = vmax.f32 %v260, %v250
        %v277 = vmax.f32 %v261, %v252
        %v278 = vadd.f32 %v262, %v238
        %v279 = vadd.f32 %v263, %v240
        %v280 = vadd.f32 %v264, %v242
        %v281 = vadd.f32 %v265, %v244
        %v282 = vadd.f32 %v266, %v246
        %v283 = vadd.f32 %v267, %v248
        %v284 = vadd.f32 %v268, %v250
        %v285 = vadd.f32 %v269, %v252
        %v286 = vmax.f32 %v270, %v239
        %v287 = vmax.f32 %v271, %v241
        %v288 = vmax.f32 %v272, %v243
        %v289 = vmax.f32 %v273, %v245
        %v290 = vmax.f32 %v274, %v247
        %v291 = vmax.f32 %v275, %v249
        %v292 = vmax.f32 %v276, %v251
        %v293 = vmax.f32 %v277, %v253
        %v294 = vadd.f32 %v278, %v239
        %v295 = vadd.f32 %v279, %v241
        %v296 = vadd.f32 %v280, %v243
        %v297 = vadd.f32 %v281, %v245
        %v298 = vadd.f32 %v282, %v247
        %v299 = vadd.f32 %v283, %v249
        %v300 = vadd.f32 %v284, %v251
        %v301 = vadd.f32 %v285, %v253
        %302 = vst [vmem:[#allocation2] sm:$0xff] %v286
        %303 = vst [vmem:[#allocation2 + $0x8] sm:$0xff] %v287
        %304 = vst [vmem:[#allocation2 + $0x10] sm:$0xff] %v288
        %305 = vst [vmem:[#allocation2 + $0x18] sm:$0xff] %v289
        %306 = vst [vmem:[#allocation2 + $0x20] sm:$0xff] %v290
        %307 = vst [vmem:[#allocation2 + $0x28] sm:$0xff] %v291
        %308 = vst [vmem:[#allocation2 + $0x30] sm:$0xff] %v292
        %309 = vst [vmem:[#allocation2 + $0x38] sm:$0xff] %v293
        %310 = vst [vmem:[#allocation3] sm:$0xff] %v294
        %311 = vst [vmem:[#allocation3 + $0x8] sm:$0xff] %v295
        %312 = vst [vmem:[#allocation3 + $0x10] sm:$0xff] %v296
        %313 = vst [vmem:[#allocation3 + $0x18] sm:$0xff] %v297
        %314 = vst [vmem:[#allocation3 + $0x20] sm:$0xff] %v298
        %315 = vst [vmem:[#allocation3 + $0x28] sm:$0xff] %v299
        %316 = vst [vmem:[#allocation3 + $0x30] sm:$0xff] %v300
        %317 = vst [vmem:[#allocation3 + $0x38] sm:$0xff] %v301
        // Predicated region
        $region45: #{tpu_custom_call.1} parent=31 // pred_check
          %p318 = pneg %p218
        $region46: #{tpu_custom_call.1} parent=31 // pred_check_branch
          %320 = sbr.rel (%p318) target = $region48
        $region47: #{tpu_custom_call.1} parent=31 // pred_region
          %v321 = vld [vmem:[#allocation2] sm:$0xff]
          %v322 = vld [vmem:[#allocation2 + $0x8] sm:$0xff]
          %v323 = vld [vmem:[#allocation2 + $0x10] sm:$0xff]
          %v324 = vld [vmem:[#allocation2 + $0x18] sm:$0xff]
          %v325 = vld [vmem:[#allocation2 + $0x20] sm:$0xff]
          %v326 = vld [vmem:[#allocation2 + $0x28] sm:$0xff]
          %v327 = vld [vmem:[#allocation2 + $0x30] sm:$0xff]
          %v328 = vld [vmem:[#allocation2 + $0x38] sm:$0xff]
          %329 = vmax.xlane.f32.xlu0 %v321
          %v330 = vpop.xlane.xlu0 %329
          %331 = vmax.xlane.f32.xlu0 %v322
          %v332 = vpop.xlane.xlu0 %331
          %333 = vmax.xlane.f32.xlu0 %v323
          %v334 = vpop.xlane.xlu0 %333
          %335 = vmax.xlane.f32.xlu0 %v324
          %v336 = vpop.xlane.xlu0 %335
          %337 = vmax.xlane.f32.xlu0 %v325
          %v338 = vpop.xlane.xlu0 %337
          %339 = vmax.xlane.f32.xlu0 %v326
          %v340 = vpop.xlane.xlu0 %339
          %341 = vmax.xlane.f32.xlu0 %v327
          %v342 = vpop.xlane.xlu0 %341
          %343 = vmax.xlane.f32.xlu0 %v328
          %v344 = vpop.xlane.xlu0 %343
          %v345 = vld [vmem:[#allocation3] sm:$0xff]
          %v346 = vld [vmem:[#allocation3 + $0x8] sm:$0xff]
          %v347 = vld [vmem:[#allocation3 + $0x10] sm:$0xff]
          %v348 = vld [vmem:[#allocation3 + $0x18] sm:$0xff]
          %v349 = vld [vmem:[#allocation3 + $0x20] sm:$0xff]
          %v350 = vld [vmem:[#allocation3 + $0x28] sm:$0xff]
          %v351 = vld [vmem:[#allocation3 + $0x30] sm:$0xff]
          %v352 = vld [vmem:[#allocation3 + $0x38] sm:$0xff]
          %353 = vadd.xlane.f32.xlu0 %v345
          %v354 = vpop.xlane.xlu0 %353
          %355 = vadd.xlane.f32.xlu0 %v346
          %v356 = vpop.xlane.xlu0 %355
          %357 = vadd.xlane.f32.xlu0 %v347
          %v358 = vpop.xlane.xlu0 %357
          %359 = vadd.xlane.f32.xlu0 %v348
          %v360 = vpop.xlane.xlu0 %359
          %361 = vadd.xlane.f32.xlu0 %v349
          %v362 = vpop.xlane.xlu0 %361
          %363 = vadd.xlane.f32.xlu0 %v350
          %v364 = vpop.xlane.xlu0 %363
          %365 = vadd.xlane.f32.xlu0 %v351
          %v366 = vpop.xlane.xlu0 %365
          %367 = vadd.xlane.f32.xlu0 %v352
          %v368 = vpop.xlane.xlu0 %367
          %v369 = vmul.f32 %v354, 0.00390625
          %v370 = vmul.f32 %v356, 0.00390625
          %v371 = vmul.f32 %v358, 0.00390625
          %v372 = vmul.f32 %v360, 0.00390625
          %v373 = vmul.f32 %v362, 0.00390625
          %v374 = vmul.f32 %v364, 0.00390625
          %v375 = vmul.f32 %v366, 0.00390625
          %v376 = vmul.f32 %v368, 0.00390625
          %v377 = vld [vmem:[#allocation7] sm:$0xf]
          %v378 = vld [vmem:[%s2] sm:$0xf]
          %v387 = vlaneseq
          %v388 = vand.u32 %v387, 127
          %v389 = vlaneseq
          %v390 = vshrl.u32 %v389, 7
          %v391 = vsub.s32 %v388, %v390
          %v392 = vrot.slane %v330, %v391
          %v393 = vadd.s32 %v388, 4294967288
          %v394 = vlaneseq
          %v395 = vshrl.u32 %v394, 7
          %v396 = vsub.s32 %v393, %v395
          %v397 = vrot.slane %v332, %v396
          %vm398 = vcmask 130112
          %v399 = vsel %vm398, %v397, %v392
          %v400 = vadd.s32 %v388, 4294967280
          %v401 = vlaneseq
          %v402 = vshrl.u32 %v401, 7
          %v403 = vsub.s32 %v400, %v402
          %v404 = vrot.slane %v334, %v403
          %vm405 = vcmask 195712
          %v406 = vsel %vm405, %v404, %v399
          %v407 = vadd.s32 %v388, 4294967272
          %v408 = vlaneseq
          %v409 = vshrl.u32 %v408, 7
          %v410 = vsub.s32 %v407, %v409
          %v411 = vrot.slane %v336, %v410
          %vm412 = vcmask 261312
          %v413 = vsel %vm412, %v411, %v406
          %v414 = vadd.s32 %v388, 4294967264
          %v415 = vlaneseq
          %v416 = vshrl.u32 %v415, 7
          %v417 = vsub.s32 %v414, %v416
          %v418 = vrot.slane %v338, %v417
          %vm419 = vcmask 326912
          %v420 = vsel %vm419, %v418, %v413
          %v421 = vadd.s32 %v388, 4294967256
          %v422 = vlaneseq
          %v423 = vshrl.u32 %v422, 7
          %v424 = vsub.s32 %v421, %v423
          %v425 = vrot.slane %v340, %v424
          %vm426 = vcmask 392512
          %v427 = vsel %vm426, %v425, %v420
          %v428 = vadd.s32 %v388, 4294967248
          %v429 = vlaneseq
          %v430 = vshrl.u32 %v429, 7
          %v431 = vsub.s32 %v428, %v430
          %v432 = vrot.slane %v342, %v431
          %vm433 = vcmask 458112
          %v434 = vsel %vm433, %v432, %v427
          %v435 = vadd.s32 %v388, 4294967240
          %v436 = vlaneseq
          %v437 = vshrl.u32 %v436, 7
          %v438 = vsub.s32 %v435, %v437
          %v439 = vrot.slane %v344, %v438
          %vm440 = vcmask 523712
          %v441 = vsel %vm440, %v439, %v434
          %vm442 = vcmask 523264
          %v443 = vsel %vm442, %v441, 0
          %v446 = vsel %vm442, %v377, 0
          %448 = vmatprep.subr.mxu0 0.0
          %449 = vmatpush1.xpose.msra.mxu0 %v446
          %450 = vmatprep.subr.mxu0 0.0
          %451 = vmatpush1.xpose.msra.mxu0 0.0
          %452 = vmatprep.subr.mxu0 0.0
          %453 = vmatpush1.xpose.msra.mxu0 0.0
          %454 = vmatprep.subr.mxu0 0.0
          %455 = vmatpush1.xpose.msra.mxu0 0.0
          %456 = vmatprep.subr.mxu0 0.0
          %457 = vmatpush1.xpose.msra.mxu0 0.0
          %458 = vmatprep.subr.mxu0 0.0
          %459 = vmatpush1.xpose.msra.mxu0 0.0
          %460 = vmatprep.subr.mxu0 0.0
          %461 = vmatpush1.xpose.msra.mxu0 0.0
          %462 = vmatprep.subr.mxu0 0.0
          %463 = vmatpush1.xpose.msra.mxu0 0.0
          %464 = vmatprep.subr.mxu0 0.0
          %465 = vmatpush1.xpose.msra.mxu0 0.0
          %466 = vmatprep.subr.mxu0 0.0
          %467 = vmatpush1.xpose.msra.mxu0 0.0
          %468 = vmatprep.subr.mxu0 0.0
          %469 = vmatpush1.xpose.msra.mxu0 0.0
          %470 = vmatprep.subr.mxu0 0.0
          %471 = vmatpush1.xpose.msra.mxu0 0.0
          %472 = vmatprep.subr.mxu0 0.0
          %473 = vmatpush1.xpose.msra.mxu0 0.0
          %474 = vmatprep.subr.mxu0 0.0
          %475 = vmatpush1.xpose.msra.mxu0 0.0
          %476 = vmatprep.subr.mxu0 0.0
          %477 = vmatpush1.xpose.msra.mxu0 0.0
          %478 = vmatprep.subr.mxu0 0.0
          %479 = vmatpush1.xpose.msra.mxu0 0.0
          %480 = vmatprep.subr.mxu0 0.0
          %481 = vmatpush1.xpose.msra.mxu0 0.0
          %482 = vmatprep.subr.mxu0 0.0
          %483 = vmatpush1.xpose.msra.mxu0 0.0
          %484 = vmatprep.subr.mxu0 0.0
          %485 = vmatpush1.xpose.msra.mxu0 0.0
          %486 = vmatprep.subr.mxu0 0.0
          %487 = vmatpush1.xpose.msra.mxu0 0.0
          %488 = vmatprep.subr.mxu0 0.0
          %489 = vmatpush1.xpose.msra.mxu0 0.0
          %490 = vmatprep.subr.mxu0 0.0
          %491 = vmatpush1.xpose.msra.mxu0 0.0
          %492 = vmatprep.subr.mxu0 0.0
          %493 = vmatpush1.xpose.msra.mxu0 0.0
          %494 = vmatprep.subr.mxu0 0.0
          %495 = vmatpush1.xpose.msra.mxu0 0.0
          %496 = vmatprep.subr.mxu0 0.0
          %497 = vmatpush1.xpose.msra.mxu0 0.0
          %498 = vmatprep.subr.mxu0 0.0
          %499 = vmatpush1.xpose.msra.mxu0 0.0
          %500 = vmatprep.subr.mxu0 0.0
          %501 = vmatpush1.xpose.msra.mxu0 0.0
          %502 = vmatprep.subr.mxu0 0.0
          %503 = vmatpush1.xpose.msra.mxu0 0.0
          %504 = vmatprep.subr.mxu0 0.0
          %505 = vmatpush1.xpose.msra.mxu0 0.0
          %506 = vmatprep.subr.mxu0 0.0
          %507 = vmatpush1.xpose.msra.mxu0 0.0
          %508 = vmatprep.subr.mxu0 0.0
          %509 = vmatpush1.xpose.msra.mxu0 0.0
          %510 = vmatprep.subr.mxu0 0.0
          %511 = vmatpush1.xpose.msra.mxu0 0.0
          %512 = vmatprep.mubr.f32.mxu0 0.0
          %513 = vmatmul.mubr.f32.gmra.mrb[0].mxu0 %v443
          %v514 = vpop.f32.mrb[0].mxu0
          %v515 = vadd.f32 0.0, %v514
          %v516 = vpop.f32.mrb[0].mxu0
          %517 = vdwg.mxu0
          %v518 = vmax.f32 %v515, 0.0
          %v527 = vlaneseq
          %v528 = vshrl.u32 %v527, 7
          %v529 = vsub.s32 %v388, %v528
          %v530 = vrot.slane %v369, %v529
          %v531 = vlaneseq
          %v532 = vshrl.u32 %v531, 7
          %v533 = vsub.s32 %v393, %v532
          %v534 = vrot.slane %v370, %v533
          %v535 = vsel %vm398, %v534, %v530
          %v536 = vlaneseq
          %v537 = vshrl.u32 %v536, 7
          %v538 = vsub.s32 %v400, %v537
          %v539 = vrot.slane %v371, %v538
          %v540 = vsel %vm405, %v539, %v535
          %v541 = vlaneseq
          %v542 = vshrl.u32 %v541, 7
          %v543 = vsub.s32 %v407, %v542
          %v544 = vrot.slane %v372, %v543
          %v545 = vsel %vm412, %v544, %v540
          %v546 = vlaneseq
          %v547 = vshrl.u32 %v546, 7
          %v548 = vsub.s32 %v414, %v547
          %v549 = vrot.slane %v373, %v548
          %v550 = vsel %vm419, %v549, %v545
          %v551 = vlaneseq
          %v552 = vshrl.u32 %v551, 7
          %v553 = vsub.s32 %v421, %v552
          %v554 = vrot.slane %v374, %v553
          %v555 = vsel %vm426, %v554, %v550
          %v556 = vlaneseq
          %v557 = vshrl.u32 %v556, 7
          %v558 = vsub.s32 %v428, %v557
          %v559 = vrot.slane %v375, %v558
          %v560 = vsel %vm433, %v559, %v555
          %v561 = vlaneseq
          %v562 = vshrl.u32 %v561, 7
          %v563 = vsub.s32 %v435, %v562
          %v564 = vrot.slane %v376, %v563
          %v565 = vsel %vm440, %v564, %v560
          %v566 = vsel %vm442, %v565, 0
          %568 = vmatprep.subr.mxu0 0.0
          %569 = vmatpush1.xpose.msra.mxu0 %v446
          %570 = vmatprep.subr.mxu0 0.0
          %571 = vmatpush1.xpose.msra.mxu0 0.0
          %572 = vmatprep.subr.mxu0 0.0
          %573 = vmatpush1.xpose.msra.mxu0 0.0
          %574 = vmatprep.subr.mxu0 0.0
          %575 = vmatpush1.xpose.msra.mxu0 0.0
          %576 = vmatprep.subr.mxu0 0.0
          %577 = vmatpush1.xpose.msra.mxu0 0.0
          %578 = vmatprep.subr.mxu0 0.0
          %579 = vmatpush1.xpose.msra.mxu0 0.0
          %580 = vmatprep.subr.mxu0 0.0
          %581 = vmatpush1.xpose.msra.mxu0 0.0
          %582 = vmatprep.subr.mxu0 0.0
          %583 = vmatpush1.xpose.msra.mxu0 0.0
          %584 = vmatprep.subr.mxu0 0.0
          %585 = vmatpush1.xpose.msra.mxu0 0.0
          %586 = vmatprep.subr.mxu0 0.0
          %587 = vmatpush1.xpose.msra.mxu0 0.0
          %588 = vmatprep.subr.mxu0 0.0
          %589 = vmatpush1.xpose.msra.mxu0 0.0
          %590 = vmatprep.subr.mxu0 0.0
          %591 = vmatpush1.xpose.msra.mxu0 0.0
          %592 = vmatprep.subr.mxu0 0.0
          %593 = vmatpush1.xpose.msra.mxu0 0.0
          %594 = vmatprep.subr.mxu0 0.0
          %595 = vmatpush1.xpose.msra.mxu0 0.0
          %596 = vmatprep.subr.mxu0 0.0
          %597 = vmatpush1.xpose.msra.mxu0 0.0
          %598 = vmatprep.subr.mxu0 0.0
          %599 = vmatpush1.xpose.msra.mxu0 0.0
          %600 = vmatprep.subr.mxu0 0.0
          %601 = vmatpush1.xpose.msra.mxu0 0.0
          %602 = vmatprep.subr.mxu0 0.0
          %603 = vmatpush1.xpose.msra.mxu0 0.0
          %604 = vmatprep.subr.mxu0 0.0
          %605 = vmatpush1.xpose.msra.mxu0 0.0
          %606 = vmatprep.subr.mxu0 0.0
          %607 = vmatpush1.xpose.msra.mxu0 0.0
          %608 = vmatprep.subr.mxu0 0.0
          %609 = vmatpush1.xpose.msra.mxu0 0.0
          %610 = vmatprep.subr.mxu0 0.0
          %611 = vmatpush1.xpose.msra.mxu0 0.0
          %612 = vmatprep.subr.mxu0 0.0
          %613 = vmatpush1.xpose.msra.mxu0 0.0
          %614 = vmatprep.subr.mxu0 0.0
          %615 = vmatpush1.xpose.msra.mxu0 0.0
          %616 = vmatprep.subr.mxu0 0.0
          %617 = vmatpush1.xpose.msra.mxu0 0.0
          %618 = vmatprep.subr.mxu0 0.0
          %619 = vmatpush1.xpose.msra.mxu0 0.0
          %620 = vmatprep.subr.mxu0 0.0
          %621 = vmatpush1.xpose.msra.mxu0 0.0
          %622 = vmatprep.subr.mxu0 0.0
          %623 = vmatpush1.xpose.msra.mxu0 0.0
          %624 = vmatprep.subr.mxu0 0.0
          %625 = vmatpush1.xpose.msra.mxu0 0.0
          %626 = vmatprep.subr.mxu0 0.0
          %627 = vmatpush1.xpose.msra.mxu0 0.0
          %628 = vmatprep.subr.mxu0 0.0
          %629 = vmatpush1.xpose.msra.mxu0 0.0
          %630 = vmatprep.subr.mxu0 0.0
          %631 = vmatpush1.xpose.msra.mxu0 0.0
          %632 = vmatprep.mubr.f32.mxu0 0.0
          %633 = vmatmul.mubr.f32.gmra.mrb[0].mxu0 %v566
          %v634 = vpop.f32.mrb[0].mxu0
          %v635 = vadd.f32 0.0, %v634
          %v636 = vpop.f32.mrb[0].mxu0
          %637 = vdwg.mxu0
          %v638 = vmax.f32 %v635, 0.0
          %v639 = vadd.f32 %v518, %v638
          %vm640 = vcmask 31744
          %v642 = vsel %vm640, %v639, 0
          %vm644 = vcmask 1043456
          %v646 = vsel %vm644, %v378, 0
          %648 = vmatprep.subr.mxu0 0.0
          %649 = vmatpush1.msra.mxu0 %v646
          %650 = vmatprep.subr.mxu0 0.0
          %651 = vmatpush1.msra.mxu0 0.0
          %652 = vmatprep.subr.mxu0 0.0
          %653 = vmatpush1.msra.mxu0 0.0
          %654 = vmatprep.subr.mxu0 0.0
          %655 = vmatpush1.msra.mxu0 0.0
          %656 = vmatprep.subr.mxu0 0.0
          %657 = vmatpush1.msra.mxu0 0.0
          %658 = vmatprep.subr.mxu0 0.0
          %659 = vmatpush1.msra.mxu0 0.0
          %660 = vmatprep.subr.mxu0 0.0
          %661 = vmatpush1.msra.mxu0 0.0
          %662 = vmatprep.subr.mxu0 0.0
          %663 = vmatpush1.msra.mxu0 0.0
          %664 = vmatprep.subr.mxu0 0.0
          %665 = vmatpush1.msra.mxu0 0.0
          %666 = vmatprep.subr.mxu0 0.0
          %667 = vmatpush1.msra.mxu0 0.0
          %668 = vmatprep.subr.mxu0 0.0
          %669 = vmatpush1.msra.mxu0 0.0
          %670 = vmatprep.subr.mxu0 0.0
          %671 = vmatpush1.msra.mxu0 0.0
          %672 = vmatprep.subr.mxu0 0.0
          %673 = vmatpush1.msra.mxu0 0.0
          %674 = vmatprep.subr.mxu0 0.0
          %675 = vmatpush1.msra.mxu0 0.0
          %676 = vmatprep.subr.mxu0 0.0
          %677 = vmatpush1.msra.mxu0 0.0
          %678 = vmatprep.subr.mxu0 0.0
          %679 = vmatpush1.msra.mxu0 0.0
          %680 = vmatprep.subr.mxu0 0.0
          %681 = vmatpush1.msra.mxu0 0.0
          %682 = vmatprep.subr.mxu0 0.0
          %683 = vmatpush1.msra.mxu0 0.0
          %684 = vmatprep.subr.mxu0 0.0
          %685 = vmatpush1.msra.mxu0 0.0
          %686 = vmatprep.subr.mxu0 0.0
          %687 = vmatpush1.msra.mxu0 0.0
          %688 = vmatprep.subr.mxu0 0.0
          %689 = vmatpush1.msra.mxu0 0.0
          %690 = vmatprep.subr.mxu0 0.0
          %691 = vmatpush1.msra.mxu0 0.0
          %692 = vmatprep.subr.mxu0 0.0
          %693 = vmatpush1.msra.mxu0 0.0
          %694 = vmatprep.subr.mxu0 0.0
          %695 = vmatpush1.msra.mxu0 0.0
          %696 = vmatprep.subr.mxu0 0.0
          %697 = vmatpush1.msra.mxu0 0.0
          %698 = vmatprep.subr.mxu0 0.0
          %699 = vmatpush1.msra.mxu0 0.0
          %700 = vmatprep.subr.mxu0 0.0
          %701 = vmatpush1.msra.mxu0 0.0
          %702 = vmatprep.subr.mxu0 0.0
          %703 = vmatpush1.msra.mxu0 0.0
          %704 = vmatprep.subr.mxu0 0.0
          %705 = vmatpush1.msra.mxu0 0.0
          %706 = vmatprep.subr.mxu0 0.0
          %707 = vmatpush1.msra.mxu0 0.0
          %708 = vmatprep.subr.mxu0 0.0
          %709 = vmatpush1.msra.mxu0 0.0
          %710 = vmatprep.subr.mxu0 0.0
          %711 = vmatpush1.msra.mxu0 0.0
          %712 = vmatprep.mubr.f32.mxu0 0.0
          %713 = vmatmul.mubr.f32.gmra.mrb[0].mxu0 %v642
          %v714 = vpop.f32.mrb[0].mxu0
          %v715 = vadd.f32 0.0, %v714
          %v716 = vpop.f32.mrb[0].mxu0
          %717 = vdwg.mxu0
          %v718 = vxor.u32 %v715, 2147483648
          %v719 = vmul.f32 %v718, 1.442695
          %v720 = vpow.pop %v719
          %v721 = vadd.f32 %v720, 1.0
          %v722 = vrcp.pop %v721
          %v723 = vmul.f32 1.0, %v722
          %vm724 = vcmask 516096
          %725 = vst.msk [vmem:[%s216] sm:$0x1] %vm724, %v723
        $region48: #{tpu_custom_call.1} parent=31 // pred_fallthru
          _
        %s726 = sand.u32 %s111, 1
        %s727 = scalar_lea.sflag [#allocation6], %s726
        %s728 = sand.u32 %s111, 1
        %s729 = scalar_lea.vmem [#allocation9], %s728
        // Predicated region
        $region49: #{tpu_custom_call.1} parent=31 // pred_check
          %p730 = pneg %p121
        $region50: #{tpu_custom_call.1} parent=31 // pred_check_branch
          %732 = sbr.rel (%p730) target = $region52
        $region51: #{tpu_custom_call.1} parent=31 // pred_region
          %s734 = ssub.s32 16, 16
          %735 = vsyncadd %s727, %s734
          %s736 = smul.addr %s25, 16
          %s737 = scalar_lea.hbm %s3, %s736
          %s739 = sshll.u32 %s729, 4
          %s740 = int_to_ptr.vmem [resolvable:$true] %s739
          %742 = dma.vmem_to_hbm [thread:$0]  %s740, 16, %s737, %s727
        $region52: #{tpu_custom_call.1} parent=31 // pred_fallthru
          _
      $region32: #{tpu_custom_call.1} parent=5 // pred_fallthru
        _
      %p743 = scmp.le.s32.totalorder 2, %s16
      // Predicated region
      $region53: #{tpu_custom_call.1} parent=5 // pred_check
        %p744 = pneg %p743
      $region54: #{tpu_custom_call.1} parent=5 // pred_check_branch
        %746 = sbr.rel (%p744) target = $region56
      $region55: #{tpu_custom_call.1} parent=5 // pred_region
        %s747 = ssub.s32 %s16, 2
        // Predicated region
        $region57: #{tpu_custom_call.1} parent=55 // pred_check
          %p748 = pneg %p127
        $region58: #{tpu_custom_call.1} parent=55 // pred_check_branch
          %750 = sbr.rel (%p748) target = $region60
        $region59: #{tpu_custom_call.1} parent=55 // pred_region
          %s751 = sand.u32 %s112, 1
          %s752 = scalar_lea.sflag [#allocation6], %s751
          %s753 = sand.u32 %s112, 1
          %s754 = scalar_lea.vmem [#allocation9], %s753
          %755 = dma.done %s752, 16
        $region60: #{tpu_custom_call.1} parent=55 // pred_fallthru
          _
      $region56: #{tpu_custom_call.1} parent=5 // pred_fallthru
        _
    $region6: #{tpu_custom_call.1} parent=1 // loop_footer
      %s20 = sadd.s32 1, %s16
    $region7: #{tpu_custom_call.1} parent=1 // loop_footer_branch
      %15 = sbr.rel target = $region3
    $region8: #{tpu_custom_call.1} parent=1 // loop_exit
      _
    %756 = vsyncpa [#allocation5], 1
    %s757 = scalar_lea.sflag [#allocation5], 1
    %758 = vsyncpa %s757, 1
    %759 = vsyncpa [#allocation8], 1
    %760 = vsyncpa [#allocation6], 1
    %s761 = scalar_lea.sflag [#allocation6], 1
    %762 = vsyncpa %s761, 1

</llo_original>
